<compile_context>
chip_gen: v5e
topology: v5e:2x2
jax: 0.10.0
libtpu: 0.0.40
codegen_flags: <defaults>
</compile_context>

<pallas_src>
import functools

import jax
import jax.numpy as jnp
from jax import lax
from jax.experimental import pallas as pl
from jax.experimental.pallas import tpu as pltpu


def _round_up(x, m):
    return (x + m - 1) // m * m


# ----------------------------- Pallas kernel -------------------------------

def _lightgcn_fused_kernel(adj_ref, bottoms_ref, x_ref, fwd_ref, bwd_ref):
    """Both propagation directions of one LightGCN layer from a single
    adjacency load.

        adj  = [adj_UJ; adj_IJ]                 (M, B)  bf16 (counts, exact)
        fwd  = adj   @ pos_bottoms_embs         (M, D)  rows [0,U)  -> user_emb
                                                        rows [U,M)  -> top_emb
        bwd  = adj^T @ [users_embs; top_embs]   (B, D)  = adj_UJ^T@users
                                                        + adj_IJ^T@tops

    The transposed contraction is a dot_general over dim 0 of the already
    VMEM-resident adjacency tile, so adj is read from HBM exactly once and
    adj.T is never materialized.
    """
    adj = adj_ref[...].astype(jnp.float32)          # bf16 -> f32 (VPU cast)
    fwd_ref[...] = jnp.dot(adj, bottoms_ref[...],
                           preferred_element_type=jnp.float32)
    dn = (((0,), (0,)), ((), ()))                   # contract rows == adj.T @ x
    bwd_ref[...] = lax.dot_general(adj, x_ref[...], dimension_numbers=dn,
                                   preferred_element_type=jnp.float32)


def lightgcn_layer(adj_cat, bottoms_pad, x_cat_pad):
    """Single fused pallas_call computing both propagation products."""
    M, Bp = adj_cat.shape
    Bp2, Dp = bottoms_pad.shape
    M2, Dp2 = x_cat_pad.shape
    assert Bp == Bp2 and M == M2 and Dp == Dp2

    # Advisory cost hint: two (M, Bp) x (*, Dp) contractions.
    flops = 2 * 2 * M * Bp * Dp
    bytes_accessed = (adj_cat.size * adj_cat.dtype.itemsize
                      + bottoms_pad.size * 4 + x_cat_pad.size * 4
                      + (M * Dp + Bp * Dp) * 4)
    cost = pl.CostEstimate(flops=flops, transcendentals=0,
                           bytes_accessed=bytes_accessed)

    # Whole-problem blocks: grid=(1,), everything resident in VMEM (~0.2 MiB).
    # At this size the kernel is launch/DMA-latency bound; the tiled
    # M-parallel x B-arbitrary grid is a scale-up TODO (see header).
    full = lambda i: (0, 0)
    return pl.pallas_call(
        _lightgcn_fused_kernel,
        out_shape=(
            jax.ShapeDtypeStruct((M, Dp), jnp.float32),    # fwd (user|top)
            jax.ShapeDtypeStruct((Bp, Dp), jnp.float32),   # bwd (bottoms)
        ),
        grid_spec=pltpu.PrefetchScalarGridSpec(
            num_scalar_prefetch=0,
            grid=(1,),
            in_specs=[
                pl.BlockSpec((M, Bp), full),    # adj_cat  (bf16)
                pl.BlockSpec((Bp, Dp), full),   # pos_bottoms_embs (padded)
                pl.BlockSpec((M, Dp), full),    # [users; tops]    (padded)
            ],
            out_specs=(
                pl.BlockSpec((M, Dp), full),
                pl.BlockSpec((Bp, Dp), full),
            ),
        ),
        compiler_params=pltpu.CompilerParams(
            dimension_semantics=("arbitrary",)),
        cost_estimate=cost,
    )(adj_cat, bottoms_pad, x_cat_pad)


# ----------------------------- jitted forward -------------------------------

@functools.partial(jax.jit, static_argnames=("num_layers",))
def lightgcn_forward(user_table, item_table, adj_cat_bf16,
                     all_top_ids, all_bottom_ids, all_users_ids, *,
                     num_layers):
    assert num_layers >= 1
    U = all_users_ids.shape[0]
    T = all_top_ids.shape[0]
    B = all_bottom_ids.shape[0]
    D = item_table.shape[1]
    M_pad, B_pad = adj_cat_bf16.shape
    D_pad = _round_up(D, 128)
    assert M_pad >= U + T and B_pad >= B

    # Embedding lookups (plain JAX gathers, fused by XLA under jit).
    # TODO(synk): at real scale fuse these gathers into the kernel via
    # num_scalar_prefetch + pl.Element row index_maps.
    top_embs = jnp.take(item_table, all_top_ids, axis=0)             # (T, D)
    pos_bottoms_embs = jnp.take(item_table, all_bottom_ids, axis=0)  # (B, D)
    all_users_embs = jnp.take(user_table, all_users_ids, axis=0)     # (U, D)

    # Lane-dense zero padding: last dims -> multiples of 128 so every vreg is
    # lane-dense and every output store is an unmasked vst.  Zero rows/cols
    # contribute nothing to either contraction, so slicing back is exact.
    bottoms_pad = jnp.zeros((B_pad, D_pad), jnp.float32)
    bottoms_pad = bottoms_pad.at[:B, :D].set(pos_bottoms_embs)
    x_cat_pad = jnp.zeros((M_pad, D_pad), jnp.float32)
    x_cat_pad = x_cat_pad.at[:U, :D].set(all_users_embs)
    x_cat_pad = x_cat_pad.at[U:U + T, :D].set(top_embs)

    # Faithful to the PyTorch loop: the body has no cross-iteration feedback,
    # so every iteration produces identical values and only the last survives.
    # Hoisted to a single fused kernel launch (num_layers is a no-op).
    fwd_pad, bwd_pad = lightgcn_layer(adj_cat_bf16, bottoms_pad, x_cat_pad)

    user_emb_temp = fwd_pad[:U, :D]
    top_emb_temp = fwd_pad[U:U + T, :D]
    pos_bottoms_emb_temp = bwd_pad[:B, :D]

    return (user_emb_temp, top_emb_temp, pos_bottoms_emb_temp,
            top_embs, pos_bottoms_embs, all_users_embs)


# ------------------------------ LightGCN model ------------------------------

class LightGCNPallas:
    def __init__(self, num_layers, user_table, item_table,
                 adj_UJ, adj_IJ, all_top_ids, all_bottom_ids, all_users_ids):
        self.num_layers = num_layers
        self.user_table = user_table          # (num_users_total, D)
        self.item_table = item_table          # (num_items_total, D)
        self.adj_UJ = adj_UJ                  # (U, B) dense float32 (reference)
        self.adj_IJ = adj_IJ                  # (T, B) dense float32 (reference)
        self.all_top_ids = all_top_ids        # (T,) int32
        self.all_bottom_ids = all_bottom_ids  # (B,) int32
        self.all_users_ids = all_users_ids    # (U,) int32

        # Concatenated, zero-padded, bf16 adjacency (built once, like the
        # PyTorch build_adj).  Counts are small integers -> exact in bf16.
        U, B = adj_UJ.shape
        T, _ = adj_IJ.shape
        M_pad = _round_up(U + T, 16)          # bf16 sublane multiple
        B_pad = _round_up(B, 128)             # lane multiple
        adj_cat = jnp.zeros((M_pad, B_pad), jnp.float32)
        adj_cat = adj_cat.at[:U, :B].set(adj_UJ)
        adj_cat = adj_cat.at[U:U + T, :B].set(adj_IJ)
        self.adj_cat_bf16 = adj_cat.astype(jnp.bfloat16)

        # synthetic id->encoded maps (identity ordering, like pd.factorize)
        self.top_idx_to_encoded = {
            int(t): i for i, t in enumerate(all_top_ids.tolist())}
        self.bottom_idx_to_encoded = {
            int(b): i for i, b in enumerate(all_bottom_ids.tolist())}

    def __call__(self):
        (user_emb_temp, top_emb_temp, pos_bottoms_emb_temp,
         top_embs, pos_bottoms_embs, all_users_embs) = lightgcn_forward(
            self.user_table, self.item_table, self.adj_cat_bf16,
            self.all_top_ids, self.all_bottom_ids, self.all_users_ids,
            num_layers=self.num_layers)
        return (user_emb_temp, top_emb_temp, pos_bottoms_emb_temp,
                self.top_idx_to_encoded, self.bottom_idx_to_encoded,
                top_embs, pos_bottoms_embs, all_users_embs)


# ---------------------------------- main ------------------------------------

if __name__ == "__main__":
    key = jax.random.PRNGKey(0)
    k_user, k_item, k_uj, k_ij = jax.random.split(key, 4)

    # Small synthetic problem: U users, T tops, B bottoms, D-dim embeddings.
    U, T, B, D = 32, 24, 40, 32
    NUM_USERS_TOTAL, NUM_ITEMS_TOTAL = 64, 128
    NUM_LAYERS = 2

    user_table = jax.random.normal(k_user, (NUM_USERS_TOTAL, D),
                                   dtype=jnp.float32)
    item_table = jax.random.normal(k_item, (NUM_ITEMS_TOTAL, D),
                                   dtype=jnp.float32)

    # Sparse-ish count adjacency matrices (dense float32 storage).
    adj_UJ = (jax.random.uniform(k_uj, (U, B)) < 0.15).astype(jnp.float32)
    adj_IJ = (jax.random.uniform(k_ij, (T, B)) < 0.15).astype(jnp.float32)

    all_users_ids = jnp.arange(U, dtype=jnp.int32)
    all_top_ids = jnp.arange(T, dtype=jnp.int32)              # item-table ids
    all_bottom_ids = jnp.arange(T, T + B, dtype=jnp.int32)    # disjoint ids

    model = LightGCNPallas(NUM_LAYERS, user_table, item_table,
                           adj_UJ, adj_IJ, all_top_ids, all_bottom_ids,
                           all_users_ids)

    (user_emb_temp, top_emb_temp, pos_bottoms_emb_temp,
     top_map, bottom_map, top_embs, pos_bottoms_embs, all_users_embs) = model()

    jax.block_until_ready((user_emb_temp, top_emb_temp, pos_bottoms_emb_temp))

    # Silent correctness check against plain-JAX reference (f32 adjacency;
    # bf16 storage of 0/1 counts is exact).
    ref_user = adj_UJ @ pos_bottoms_embs
    ref_top = adj_IJ @ pos_bottoms_embs
    ref_bottom = adj_UJ.T @ all_users_embs + adj_IJ.T @ top_embs
    assert jnp.allclose(user_emb_temp, ref_user, atol=1e-4, rtol=1e-4)
    assert jnp.allclose(top_emb_temp, ref_top, atol=1e-4, rtol=1e-4)
    assert jnp.allclose(pos_bottoms_emb_temp, ref_bottom, atol=1e-4, rtol=1e-4)
    assert user_emb_temp.shape == (U, D)
    assert top_emb_temp.shape == (T, D)
    assert pos_bottoms_emb_temp.shape == (B, D)

    print("KERNEL_OK")
</pallas_src>

<mosaic_0001>
module attributes {stable_mosaic.version = 11 : i64} {
  func.func @_lightgcn_fused_kernel(%arg0: i32, %arg1: memref<64x128xbf16, #tpu.memory_space<vmem>>, %arg2: memref<128x128xf32, #tpu.memory_space<vmem>>, %arg3: memref<64x128xf32, #tpu.memory_space<vmem>>, %arg4: memref<64x128xf32, #tpu.memory_space<vmem>>, %arg5: memref<128x128xf32, #tpu.memory_space<vmem>>) attributes {dimension_semantics = [#tpu.dimension_semantics<arbitrary>], iteration_bounds = array<i64: 1>, scalar_prefetch = 0 : i64, scratch_operands = 0 : i64, tpu.core_type = #tpu.core_type<tc>, window_params = [{pipeline_mode = #tpu.pipeline_mode<synchronous>, transform_indices = @transform_0, window_bounds = array<i64: 64, 128>}, {pipeline_mode = #tpu.pipeline_mode<synchronous>, transform_indices = @transform_1, window_bounds = array<i64: 128, 128>}, {pipeline_mode = #tpu.pipeline_mode<synchronous>, transform_indices = @transform_2, window_bounds = array<i64: 64, 128>}, {pipeline_mode = #tpu.pipeline_mode<synchronous>, transform_indices = @transform_3, window_bounds = array<i64: 64, 128>}, {pipeline_mode = #tpu.pipeline_mode<synchronous>, transform_indices = @transform_4, window_bounds = array<i64: 128, 128>}]} {
    %c0 = arith.constant 0 : index
    %c0_0 = arith.constant 0 : index
    %0 = vector.load %arg1[%c0, %c0_0] : memref<64x128xbf16, #tpu.memory_space<vmem>>, vector<64x128xbf16>
    %1 = arith.extf %0 : vector<64x128xbf16> to vector<64x128xf32>
    %c0_1 = arith.constant 0 : index
    %c0_2 = arith.constant 0 : index
    %2 = vector.load %arg2[%c0_1, %c0_2] : memref<128x128xf32, #tpu.memory_space<vmem>>, vector<128x128xf32>
    %cst = arith.constant dense<0.000000e+00> : vector<64x128xf32>
    %3 = tpu.matmul %1, %2, %cst {dimension_numbers = #tpu.dot_dimension_numbers<[1], [0], [0], [1], [0, 0, 1, 1], [], []>} : vector<64x128xf32>, vector<128x128xf32>, vector<64x128xf32> -> vector<64x128xf32>
    %c0_3 = arith.constant 0 : index
    %c0_4 = arith.constant 0 : index
    %4 = vector.load %arg4[%c0_3, %c0_4] : memref<64x128xf32, #tpu.memory_space<vmem>>, vector<64x128xf32>
    tpu.vector_store %arg4[%c0_3, %c0_4], %3 {strides = array<i32>} : memref<64x128xf32, #tpu.memory_space<vmem>>, vector<64x128xf32>,
    %c0_5 = arith.constant 0 : index
    %c0_6 = arith.constant 0 : index
    %5 = vector.load %arg3[%c0_5, %c0_6] : memref<64x128xf32, #tpu.memory_space<vmem>>, vector<64x128xf32>
    %cst_7 = arith.constant dense<0.000000e+00> : vector<128x128xf32>
    %6 = tpu.matmul %1, %5, %cst_7 {dimension_numbers = #tpu.dot_dimension_numbers<[0], [0], [1], [1], [0, 1, 1, 1], [], []>} : vector<64x128xf32>, vector<64x128xf32>, vector<128x128xf32> -> vector<128x128xf32>
    %c0_8 = arith.constant 0 : index
    %c0_9 = arith.constant 0 : index
    %7 = vector.load %arg5[%c0_8, %c0_9] : memref<128x128xf32, #tpu.memory_space<vmem>>, vector<128x128xf32>
    tpu.vector_store %arg5[%c0_8, %c0_9], %6 {strides = array<i32>} : memref<128x128xf32, #tpu.memory_space<vmem>>, vector<128x128xf32>,
    return
  }
  func.func @transform_0(%arg0: i32) -> (i32, i32) {
    %c0_i32 = arith.constant 0 : i32
    %c0_i32_0 = arith.constant 0 : i32
    %c0_i32_1 = arith.constant 0 : i32
    return %c0_i32, %c0_i32_0 : i32, i32
  }
  func.func @transform_1(%arg0: i32) -> (i32, i32) {
    %c0_i32 = arith.constant 0 : i32
    %c0_i32_0 = arith.constant 0 : i32
    %c0_i32_1 = arith.constant 0 : i32
    return %c0_i32, %c0_i32_0 : i32, i32
  }
  func.func @transform_2(%arg0: i32) -> (i32, i32) {
    %c0_i32 = arith.constant 0 : i32
    %c0_i32_0 = arith.constant 0 : i32
    %c0_i32_1 = arith.constant 0 : i32
    return %c0_i32, %c0_i32_0 : i32, i32
  }
  func.func @transform_3(%arg0: i32) -> (i32, i32) {
    %c0_i32 = arith.constant 0 : i32
    %c0_i32_0 = arith.constant 0 : i32
    %c0_i32_1 = arith.constant 0 : i32
    return %c0_i32, %c0_i32_0 : i32, i32
  }
  func.func @transform_4(%arg0: i32) -> (i32, i32) {
    %c0_i32 = arith.constant 0 : i32
    %c0_i32_0 = arith.constant 0 : i32
    %c0_i32_1 = arith.constant 0 : i32
    return %c0_i32, %c0_i32_0 : i32, i32
  }
}

</mosaic_0001>

<llo_original>
// kernel: lightgcn_forward.1
$region0: #{lightgcn_forward.1}
  #allocation0 [shape = 'u32[]', space=smem, size = 0x4, offset = 0x4, fixed_abs, tag = 'smem constant byte address 0x4 - core index']
  #allocation1 [shape = 'u32[72,128]{1,0:T(1,128)}', space=vmem, size = 0x9000, scoped, tag = 'internal scratch']
  %s0 = inlined_call_operand.vmem [shape: bf16[64,128], index: 0, kind: input, shape index: {}]
  %s1 = inlined_call_operand.vmem [shape: f32[128,128], index: 1, kind: input, shape index: {}]
  %s2 = inlined_call_operand.vmem [shape: f32[64,128], index: 2, kind: input, shape index: {}]
  %s3 = inlined_call_operand.vmem [shape: f32[64,128], index: 3, kind: output, shape index: {0}]
  %s4 = inlined_call_operand.vmem [shape: f32[128,128], index: 4, kind: output, shape index: {1}]
  %5 = xla_tuple %s3, %s4
  %s6 = sld [smem:[#allocation0]]
  $region30: #{lightgcn_forward.1} parent=0
    _
  %s8 = ssub.s32 1, %s6
  %s9 = scalar_select 0, %s8, %s6
  // Predicated region
  $region2: #{lightgcn_forward.1} parent=0 // pred_check
    _
  $region3: #{lightgcn_forward.1} parent=0 // pred_check_branch
    %11 = sbr.rel (0) target = $region5
  $region4: #{lightgcn_forward.1} parent=0 // pred_region
    _
  $region5: #{lightgcn_forward.1} parent=0 // pred_fallthru
    _
  // Predicated region
  $region6: #{lightgcn_forward.1} parent=0 // pred_check
    _
  $region7: #{lightgcn_forward.1} parent=0 // pred_check_branch
    %13 = sbr.rel (0) target = $region9
  $region8: #{lightgcn_forward.1} parent=0 // pred_region
    _
  $region9: #{lightgcn_forward.1} parent=0 // pred_fallthru
    _
  // Predicated region
  $region10: #{lightgcn_forward.1} parent=0 // pred_check
    _
  $region11: #{lightgcn_forward.1} parent=0 // pred_check_branch
    %15 = sbr.rel (0) target = $region13
  $region12: #{lightgcn_forward.1} parent=0 // pred_region
    _
  $region13: #{lightgcn_forward.1} parent=0 // pred_fallthru
    _
  %v16 = vld [vmem:[%s0] sm:$0xf]
  %v17 = vld [vmem:[%s0 + $0x4] sm:$0xf]
  %v18 = vld [vmem:[%s0 + $0x8] sm:$0xf]
  %v19 = vld [vmem:[%s0 + $0xc] sm:$0xf]
  %v20 = vld [vmem:[%s0 + $0x10] sm:$0xf]
  %v21 = vld [vmem:[%s0 + $0x14] sm:$0xf]
  %v22 = vld [vmem:[%s0 + $0x18] sm:$0xf]
  %v23 = vld [vmem:[%s0 + $0x1c] sm:$0xf]
  %v24 = vunpack.c.l.bf16 %v16
  %v25 = vunpack.c.l.bf16 %v17
  %v26 = vunpack.c.l.bf16 %v18
  %v27 = vunpack.c.l.bf16 %v19
  %v28 = vunpack.c.l.bf16 %v20
  %v29 = vunpack.c.l.bf16 %v21
  %v30 = vunpack.c.l.bf16 %v22
  %v31 = vunpack.c.l.bf16 %v23
  %v32 = vld [vmem:[%s1] sm:$0xff]
  %v33 = vld [vmem:[%s1 + $0x8] sm:$0xff]
  %v34 = vld [vmem:[%s1 + $0x10] sm:$0xff]
  %v35 = vld [vmem:[%s1 + $0x18] sm:$0xff]
  %v36 = vld [vmem:[%s1 + $0x20] sm:$0xff]
  %v37 = vld [vmem:[%s1 + $0x28] sm:$0xff]
  %v38 = vld [vmem:[%s1 + $0x30] sm:$0xff]
  %v39 = vld [vmem:[%s1 + $0x38] sm:$0xff]
  %v40 = vld [vmem:[%s1 + $0x40] sm:$0xff]
  %v41 = vld [vmem:[%s1 + $0x48] sm:$0xff]
  %v42 = vld [vmem:[%s1 + $0x50] sm:$0xff]
  %v43 = vld [vmem:[%s1 + $0x58] sm:$0xff]
  %v44 = vld [vmem:[%s1 + $0x60] sm:$0xff]
  %v45 = vld [vmem:[%s1 + $0x68] sm:$0xff]
  %v46 = vld [vmem:[%s1 + $0x70] sm:$0xff]
  %v47 = vld [vmem:[%s1 + $0x78] sm:$0xff]
  %48 = vmatpush.msra.mxu0 %v47
  %49 = vmatpush.msra.mxu0 %v46
  %50 = vmatpush.msra.mxu0 %v45
  %51 = vmatpush.msra.mxu0 %v44
  %52 = vmatpush.msra.mxu0 %v43
  %53 = vmatpush.msra.mxu0 %v42
  %54 = vmatpush.msra.mxu0 %v41
  %55 = vmatpush.msra.mxu0 %v40
  %56 = vmatpush.msra.mxu0 %v39
  %57 = vmatpush.msra.mxu0 %v38
  %58 = vmatpush.msra.mxu0 %v37
  %59 = vmatpush.msra.mxu0 %v36
  %60 = vmatpush.msra.mxu0 %v35
  %61 = vmatpush.msra.mxu0 %v34
  %62 = vmatpush.msra.mxu0 %v33
  %63 = vmatpush.msra.mxu0 %v32
  %64 = vmatmul.f32.gmra.mxu0 %v24
  %v65 = vpop.f32.mrf.mxu0
  %v66 = vadd.f32 0.0, %v65
  %67 = vmatmul.f32.gmra.mxu0 %v25
  %v68 = vpop.f32.mrf.mxu0
  %v69 = vadd.f32 0.0, %v68
  %70 = vmatmul.f32.gmra.mxu0 %v26
  %v71 = vpop.f32.mrf.mxu0
  %v72 = vadd.f32 0.0, %v71
  %73 = vmatmul.f32.gmra.mxu0 %v27
  %v74 = vpop.f32.mrf.mxu0
  %v75 = vadd.f32 0.0, %v74
  %76 = vmatmul.f32.gmra.mxu0 %v28
  %v77 = vpop.f32.mrf.mxu0
  %v78 = vadd.f32 0.0, %v77
  %79 = vmatmul.f32.gmra.mxu0 %v29
  %v80 = vpop.f32.mrf.mxu0
  %v81 = vadd.f32 0.0, %v80
  %82 = vmatmul.f32.gmra.mxu0 %v30
  %v83 = vpop.f32.mrf.mxu0
  %v84 = vadd.f32 0.0, %v83
  %85 = vmatmul.f32.gmra.mxu0 %v31
  %v86 = vpop.f32.mrf.mxu0
  %v87 = vadd.f32 0.0, %v86
  %88 = vdwg.mxu0
  %89 = vst [vmem:[%s3] sm:$0xff] %v66
  %90 = vst [vmem:[%s3 + $0x8] sm:$0xff] %v69
  %91 = vst [vmem:[%s3 + $0x10] sm:$0xff] %v72
  %92 = vst [vmem:[%s3 + $0x18] sm:$0xff] %v75
  %93 = vst [vmem:[%s3 + $0x20] sm:$0xff] %v78
  %94 = vst [vmem:[%s3 + $0x28] sm:$0xff] %v81
  %95 = vst [vmem:[%s3 + $0x30] sm:$0xff] %v84
  %96 = vst [vmem:[%s3 + $0x38] sm:$0xff] %v87
  %v97 = vld [vmem:[%s2] sm:$0xff]
  %v98 = vld [vmem:[%s2 + $0x8] sm:$0xff]
  %v99 = vld [vmem:[%s2 + $0x10] sm:$0xff]
  %v100 = vld [vmem:[%s2 + $0x18] sm:$0xff]
  %v101 = vld [vmem:[%s2 + $0x20] sm:$0xff]
  %v102 = vld [vmem:[%s2 + $0x28] sm:$0xff]
  %v103 = vld [vmem:[%s2 + $0x30] sm:$0xff]
  %v104 = vld [vmem:[%s2 + $0x38] sm:$0xff]
  %105 = vxpose.xlu0.b32.start [1/16] %v24, 128
  %106 = vxpose.xlu0.b32.cont [2/16] %v25, 128
  %107 = vxpose.xlu0.b32.cont [3/16] %v26, 128
  %108 = vxpose.xlu0.b32.cont [4/16] %v27, 128
  %109 = vxpose.xlu0.b32.cont [5/16] %v28, 128
  %110 = vxpose.xlu0.b32.cont [6/16] %v29, 128
  %111 = vxpose.xlu0.b32.cont [7/16] %v30, 128
  %112 = vxpose.xlu0.b32.cont [8/16] %v31, 128
  %113 = vxpose.xlu0.b32.cont [9/16] 0.0, 128
  %114 = vxpose.xlu0.b32.cont [10/16] 0.0, 128
  %115 = vxpose.xlu0.b32.cont [11/16] 0.0, 128
  %116 = vxpose.xlu0.b32.cont [12/16] 0.0, 128
  %117 = vxpose.xlu0.b32.cont [13/16] 0.0, 128
  %118 = vxpose.xlu0.b32.cont [14/16] 0.0, 128
  %119 = vxpose.xlu0.b32.cont [15/16] 0.0, 128
  %120 = vxpose.xlu0.b32.end [16/16] 0.0, 128
  %v121 = vpop.trf.xlu0
  %v122 = vpop.trf.xlu0
  %v123 = vpop.trf.xlu0
  %v124 = vpop.trf.xlu0
  %v125 = vpop.trf.xlu0
  %v126 = vpop.trf.xlu0
  %v127 = vpop.trf.xlu0
  %v128 = vpop.trf.xlu0
  %v129 = vpop.trf.xlu0
  %v130 = vpop.trf.xlu0
  %v131 = vpop.trf.xlu0
  %v132 = vpop.trf.xlu0
  %v133 = vpop.trf.xlu0
  %v134 = vpop.trf.xlu0
  %v135 = vpop.trf.xlu0
  %v136 = vpop.trf.xlu0
  %vm137 = vcmask 523264
  %v139 = vsel %vm137, %v121, 0
  %v142 = vsel %vm137, %v122, 0
  %v145 = vsel %vm137, %v123, 0
  %v148 = vsel %vm137, %v124, 0
  %v151 = vsel %vm137, %v125, 0
  %v154 = vsel %vm137, %v126, 0
  %v157 = vsel %vm137, %v127, 0
  %v160 = vsel %vm137, %v128, 0
  %v163 = vsel %vm137, %v129, 0
  %v166 = vsel %vm137, %v130, 0
  %v169 = vsel %vm137, %v131, 0
  %v172 = vsel %vm137, %v132, 0
  %v175 = vsel %vm137, %v133, 0
  %v178 = vsel %vm137, %v134, 0
  %v181 = vsel %vm137, %v135, 0
  %v184 = vsel %vm137, %v136, 0
  %186 = vmatpush.msra.mxu0 0.0
  %187 = vmatpush.msra.mxu0 0.0
  %188 = vmatpush.msra.mxu0 0.0
  %189 = vmatpush.msra.mxu0 0.0
  %190 = vmatpush.msra.mxu0 0.0
  %191 = vmatpush.msra.mxu0 0.0
  %192 = vmatpush.msra.mxu0 0.0
  %193 = vmatpush.msra.mxu0 0.0
  %194 = vmatpush.msra.mxu0 %v104
  %195 = vmatpush.msra.mxu0 %v103
  %196 = vmatpush.msra.mxu0 %v102
  %197 = vmatpush.msra.mxu0 %v101
  %198 = vmatpush.msra.mxu0 %v100
  %199 = vmatpush.msra.mxu0 %v99
  %200 = vmatpush.msra.mxu0 %v98
  %201 = vmatpush.msra.mxu0 %v97
  %202 = vmatmul.f32.gmra.mxu0 %v139
  %v203 = vpop.f32.mrf.mxu0
  %v204 = vadd.f32 0.0, %v203
  %205 = vmatmul.f32.gmra.mxu0 %v142
  %v206 = vpop.f32.mrf.mxu0
  %v207 = vadd.f32 0.0, %v206
  %208 = vmatmul.f32.gmra.mxu0 %v145
  %v209 = vpop.f32.mrf.mxu0
  %v210 = vadd.f32 0.0, %v209
  %211 = vmatmul.f32.gmra.mxu0 %v148
  %v212 = vpop.f32.mrf.mxu0
  %v213 = vadd.f32 0.0, %v212
  %214 = vmatmul.f32.gmra.mxu0 %v151
  %v215 = vpop.f32.mrf.mxu0
  %v216 = vadd.f32 0.0, %v215
  %217 = vmatmul.f32.gmra.mxu0 %v154
  %v218 = vpop.f32.mrf.mxu0
  %v219 = vadd.f32 0.0, %v218
  %220 = vmatmul.f32.gmra.mxu0 %v157
  %v221 = vpop.f32.mrf.mxu0
  %v222 = vadd.f32 0.0, %v221
  %223 = vmatmul.f32.gmra.mxu0 %v160
  %v224 = vpop.f32.mrf.mxu0
  %v225 = vadd.f32 0.0, %v224
  %226 = vmatmul.f32.gmra.mxu0 %v163
  %v227 = vpop.f32.mrf.mxu0
  %v228 = vadd.f32 0.0, %v227
  %229 = vmatmul.f32.gmra.mxu0 %v166
  %v230 = vpop.f32.mrf.mxu0
  %v231 = vadd.f32 0.0, %v230
  %232 = vmatmul.f32.gmra.mxu0 %v169
  %v233 = vpop.f32.mrf.mxu0
  %v234 = vadd.f32 0.0, %v233
  %235 = vmatmul.f32.gmra.mxu0 %v172
  %v236 = vpop.f32.mrf.mxu0
  %v237 = vadd.f32 0.0, %v236
  %238 = vmatmul.f32.gmra.mxu0 %v175
  %v239 = vpop.f32.mrf.mxu0
  %v240 = vadd.f32 0.0, %v239
  %241 = vmatmul.f32.gmra.mxu0 %v178
  %v242 = vpop.f32.mrf.mxu0
  %v243 = vadd.f32 0.0, %v242
  %244 = vmatmul.f32.gmra.mxu0 %v181
  %v245 = vpop.f32.mrf.mxu0
  %v246 = vadd.f32 0.0, %v245
  %247 = vmatmul.f32.gmra.mxu0 %v184
  %v248 = vpop.f32.mrf.mxu0
  %v249 = vadd.f32 0.0, %v248
  %250 = vdwg.mxu0
  %251 = vst [vmem:[%s4] sm:$0xff] %v204
  %252 = vst [vmem:[%s4 + $0x8] sm:$0xff] %v207
  %253 = vst [vmem:[%s4 + $0x10] sm:$0xff] %v210
  %254 = vst [vmem:[%s4 + $0x18] sm:$0xff] %v213
  %255 = vst [vmem:[%s4 + $0x20] sm:$0xff] %v216
  %256 = vst [vmem:[%s4 + $0x28] sm:$0xff] %v219
  %257 = vst [vmem:[%s4 + $0x30] sm:$0xff] %v222
  %258 = vst [vmem:[%s4 + $0x38] sm:$0xff] %v225
  %259 = vst [vmem:[%s4 + $0x40] sm:$0xff] %v228
  %260 = vst [vmem:[%s4 + $0x48] sm:$0xff] %v231
  %261 = vst [vmem:[%s4 + $0x50] sm:$0xff] %v234
  %262 = vst [vmem:[%s4 + $0x58] sm:$0xff] %v237
  %263 = vst [vmem:[%s4 + $0x60] sm:$0xff] %v240
  %264 = vst [vmem:[%s4 + $0x68] sm:$0xff] %v243
  %265 = vst [vmem:[%s4 + $0x70] sm:$0xff] %v246
  %266 = vst [vmem:[%s4 + $0x78] sm:$0xff] %v249
  // Predicated region
  $region14: #{lightgcn_forward.1} parent=0 // pred_check
    _
  $region15: #{lightgcn_forward.1} parent=0 // pred_check_branch
    %268 = sbr.rel (0) target = $region17
  $region16: #{lightgcn_forward.1} parent=0 // pred_region
    _
  $region17: #{lightgcn_forward.1} parent=0 // pred_fallthru
    _
  // Predicated region
  $region18: #{lightgcn_forward.1} parent=0 // pred_check
    _
  $region19: #{lightgcn_forward.1} parent=0 // pred_check_branch
    %270 = sbr.rel (0) target = $region21
  $region20: #{lightgcn_forward.1} parent=0 // pred_region
    _
  $region21: #{lightgcn_forward.1} parent=0 // pred_fallthru
    _
  // Predicated region
  $region22: #{lightgcn_forward.1} parent=0 // pred_check
    _
  $region23: #{lightgcn_forward.1} parent=0 // pred_check_branch
    %272 = sbr.rel (0) target = $region25
  $region24: #{lightgcn_forward.1} parent=0 // pred_region
    _
  $region25: #{lightgcn_forward.1} parent=0 // pred_fallthru
    _
  // Predicated region
  $region26: #{lightgcn_forward.1} parent=0 // pred_check
    _
  $region27: #{lightgcn_forward.1} parent=0 // pred_check_branch
    %274 = sbr.rel (0) target = $region29
  $region28: #{lightgcn_forward.1} parent=0 // pred_region
    _
  $region29: #{lightgcn_forward.1} parent=0 // pred_fallthru
    _

</llo_original>
